<compile_context>
chip_gen: v6e
topology: v6e:2x2x1
jax: 0.10.0
libtpu: 0.0.40
codegen_flags: <defaults>
</compile_context>

<pallas_src>
import functools

import numpy as np
import jax
import jax.numpy as jnp
from jax import lax
from jax.experimental import pallas as pl
from jax.experimental.pallas import tpu as pltpu

_EPS = 1e-16  # matches contrastyou KL_div default eps


def _round_up(x, m):
    return ((x + m - 1) // m) * m


def _multicore_kl_kernel(x_ref, t_ref, m_ref, o_ref, sel_ref, w_ref, *, bn):
    # x_ref  : (Bn, C, TP)   predict_simplex tile, native dtype (f32/bf16)
    # t_ref  : (Bn, G, TP)   one-hot target tile, native dtype
    # m_ref  : (G, C)        static 0/1 group-membership matrix, x.dtype
    # o_ref  : (1, 1, 8, 128) per-grid-step partial-sum output block, f32
    # sel_ref, w_ref : (Bn, TP) f32 VMEM scratch (selected group prob / pixel-valid mask)
    m = m_ref[...]

    def per_item(b, carry):
        xb = x_ref[b]                                   # (C, TP) native dtype, straight to MXU
        tb = t_ref[b].astype(jnp.float32)               # (G, TP) exact 0/1 in f32
        # Channel -> group sum on the MXU; bf16 x bf16 -> f32 accumulation is native.
        # TODO(synk): bundle-verify tiny-K MXU cost vs static VPU row-adds when C <= 8.
        reduced = jnp.dot(m, xb, preferred_element_type=jnp.float32)   # (G, TP) f32
        # One-hot select: s = reduced at the labelled group; w = 1 labelled pixel, 0 padded.
        sel_ref[pl.ds(b, 1), :] = jnp.sum(tb * reduced, axis=0, keepdims=True)
        w_ref[pl.ds(b, 1), :] = jnp.sum(tb, axis=0, keepdims=True)
        return carry

    lax.fori_loop(0, bn, per_item, 0)

    # One sublane-dense log over the (Bn, TP) slab (EUP). Exact for strictly one-hot targets:
    #   sum_G -t*log((r+eps)/(t+eps)) == -log(r[label]+eps);  w zeroes padded pixels exactly.
    kl = -w_ref[...] * jnp.log(sel_ref[...] + _EPS)                       # (Bn, TP) f32
    total = jnp.sum(kl, axis=1, keepdims=True).sum(axis=0, keepdims=True)  # (1, 1)
    o_ref[0, 0] = jnp.broadcast_to(total, (8, 128))


def _choose_tp(P, max_tp=2048):
    """Lane-dense spatial tile: multiple of 128, <= max_tp; pad P instead of degenerating."""
    max_tp = max(128, (max_tp // 128) * 128)
    if P <= max_tp:
        return _round_up(P, 128)                 # single lane-dense tile (pad up if needed)
    floor = max(128, min(512, max_tp // 4))      # refuse degenerate tiny divisors
    for tp in range(max_tp, floor - 1, -128):
        if P % tp == 0:
            return tp                            # divisor of P -> no spatial padding
    return max_tp                                # otherwise pad P up to a multiple of max_tp


def _choose_bn(N, per_item_bytes, target_bytes=4 << 20, max_bn=32):
    """Pack batch items per step to ~target_bytes; prefer multiples of 8 (dense log slab)."""
    want = int(max(1, min(max_bn, N, target_bytes // max(per_item_bytes, 1))))
    divisors = [b for b in range(1, want + 1) if N % b == 0]
    div8 = [b for b in divisors if b % 8 == 0]
    return max(div8) if div8 else max(divisors)


def multicore_kl_loss(predict_simplex, onehot_target, groups, *, max_tp=2048,
                      step_bytes=4 << 20, max_bn=32, assume_onehot=True):
    """predict_simplex: (N, C, H, W) simplex over C; onehot_target: (N, G, H, W) one-hot over G.

    NOTE: like the PyTorch module (which asserts one_hot(target)), this kernel is only exact
    for strictly 0/1 targets; label-smoothed / soft targets are not supported.
    """
    if not assume_onehot:
        raise NotImplementedError("MultiCoreKL kernel requires strictly one-hot targets.")

    N, C, H, W = predict_simplex.shape
    G = len(groups)
    assert onehot_target.shape == (N, G, H, W)
    P = H * W

    # No dtype cast: keep HBM traffic in the native (possibly bf16) dtype.
    x = predict_simplex.reshape(N, C, P)
    t = onehot_target.reshape(N, G, P)

    # Static 0/1 membership matrix in x.dtype (0/1 exact in bf16) -> homogeneous MXU operands.
    m_np = np.zeros((G, C), np.float32)
    for g, idxs in enumerate(groups):
        m_np[g, np.asarray(idxs, dtype=np.int32)] = 1.0
    m = jnp.asarray(m_np, dtype=x.dtype)

    TP = _choose_tp(P, max_tp=max_tp)
    P_pad = _round_up(P, TP)

    x_itemsize = np.dtype(x.dtype).itemsize
    t_itemsize = np.dtype(t.dtype).itemsize
    per_item_bytes = C * TP * x_itemsize + G * TP * t_itemsize
    Bn = _choose_bn(N, per_item_bytes, target_bytes=step_bytes, max_bn=max_bn)
    nN, nP = N // Bn, P_pad // TP

    # v7x megacore: guarantee >= 2 grid steps so ("parallel","parallel") can shard across TCs.
    if nN * nP < 2:
        if N >= 2:
            Bn = max(b for b in range(1, N) if N % b == 0)
            nN = N // Bn
        elif P_pad > 128:
            TP = max(128, ((TP // 2) // 128) * 128)
            P_pad = _round_up(P, TP)
            nP = P_pad // TP

    if P_pad > P:
        # Zero one-hot padding -> w mask is 0 there -> contributes exactly 0 to the loss.
        x = jnp.pad(x, ((0, 0), (0, 0), (0, P_pad - P)))
        t = jnp.pad(t, ((0, 0), (0, 0), (0, P_pad - P)))

    kernel = functools.partial(_multicore_kl_kernel, bn=Bn)

    cost = pl.CostEstimate(
        flops=int(2 * N * G * C * P_pad + 6 * N * P_pad),
        transcendentals=int(N * P_pad),
        bytes_accessed=int(N * C * P_pad * x_itemsize + N * G * P_pad * t_itemsize
                           + nN * nP * 8 * 128 * 4),
    )

    partials = pl.pallas_call(
        kernel,
        out_shape=jax.ShapeDtypeStruct((nN, nP, 8, 128), jnp.float32),
        grid_spec=pltpu.PrefetchScalarGridSpec(
            num_scalar_prefetch=0,
            grid=(nN, nP),
            in_specs=[
                pl.BlockSpec((Bn, C, TP), lambda n, p: (n, 0, p)),
                pl.BlockSpec((Bn, G, TP), lambda n, p: (n, 0, p)),
                pl.BlockSpec((G, C), lambda n, p: (0, 0)),
            ],
            out_specs=pl.BlockSpec((1, 1, 8, 128), lambda n, p: (n, p, 0, 0)),
            scratch_shapes=[
                pltpu.VMEM((Bn, TP), jnp.float32),   # selected group prob per pixel
                pltpu.VMEM((Bn, TP), jnp.float32),   # pixel-valid mask (sum_G target)
            ],
        ),
        # Per-step VMEM: 2x double-buffered input blocks (~<= 8 MiB) + 2 (Bn,TP) f32 scratches
        # + a 4 KiB output block -> well under the 32 MiB default scoped limit on v5e/v6e/v7x.
        compiler_params=pltpu.CompilerParams(
            dimension_semantics=("parallel", "parallel"),
        ),
        cost_estimate=cost,
    )(x, t, m)

    # TODO(synk): emit one scalar per step to an SMEM-space (nN, nP) output to drop the
    # broadcast block + strided readback (~1% on current generations).
    return partials[:, :, 0, 0].sum() / jnp.float32(N * P)


def _reference_loss(predict_simplex, onehot_target, groups):
    # Pure-JAX reference mirroring the PyTorch module (full KL_div expression, f32).
    pred = predict_simplex.astype(jnp.float32)
    tgt = onehot_target.astype(jnp.float32)
    red = jnp.concatenate(
        [pred[:, jnp.asarray(g)].sum(1, keepdims=True) for g in groups], axis=1
    )
    kl = -tgt * jnp.log((red + _EPS) / (tgt + _EPS))
    return kl.sum(1).mean()


if __name__ == "__main__":
    key = jax.random.PRNGKey(0)
    k1, k2, k3, k4, k5, k6 = jax.random.split(key, 6)

    # --- Test 1: small f32 case (single spatial tile; megacore split over the batch) ---
    N, C, H, W = 2, 4, 16, 16
    groups = [[0, 1], [2, 3]]
    G = len(groups)

    logits = jax.random.normal(k1, (N, C, H, W), dtype=jnp.float32)
    predict_simplex = jax.nn.softmax(logits, axis=1)                       # simplex over C
    labels = jax.random.randint(k2, (N, H, W), 0, G)
    onehot_target = jax.nn.one_hot(labels, G, axis=1, dtype=jnp.float32)   # one-hot over G

    loss = jax.block_until_ready(multicore_kl_loss(predict_simplex, onehot_target, groups))
    ref = _reference_loss(predict_simplex, onehot_target, groups)
    assert jnp.allclose(loss, ref, rtol=1e-5, atol=1e-6), (loss, ref)

    # --- Test 2: bf16 native dtype + spatial tiling path (nP > 1, Bn > 1, fori_loop) ---
    N2, C2, H2, W2 = 3, 6, 32, 32
    groups2 = [[0, 1], [2, 3], [4, 5]]
    G2 = len(groups2)

    logits2 = jax.random.normal(k3, (N2, C2, H2, W2), dtype=jnp.float32)
    pred2 = jax.nn.softmax(logits2, axis=1).astype(jnp.bfloat16)
    labels2 = jax.random.randint(k4, (N2, H2, W2), 0, G2)
    tgt2 = jax.nn.one_hot(labels2, G2, axis=1, dtype=jnp.bfloat16)

    loss2 = jax.block_until_ready(multicore_kl_loss(pred2, tgt2, groups2, max_tp=256))
    ref2 = _reference_loss(pred2, tgt2, groups2)
    assert jnp.allclose(loss2, ref2, rtol=1e-4, atol=1e-5), (loss2, ref2)

    # --- Test 3: odd spatial size -> lane-padding path (w mask must zero padded pixels) ---
    N3, C3, H3, W3 = 2, 4, 17, 17
    groups3 = [[0, 1, 2], [3]]
    G3 = len(groups3)

    logits3 = jax.random.normal(k5, (N3, C3, H3, W3), dtype=jnp.float32)
    pred3 = jax.nn.softmax(logits3, axis=1)
    labels3 = jax.random.randint(k6, (N3, H3, W3), 0, G3)
    tgt3 = jax.nn.one_hot(labels3, G3, axis=1, dtype=jnp.float32)

    loss3 = jax.block_until_ready(multicore_kl_loss(pred3, tgt3, groups3))
    ref3 = _reference_loss(pred3, tgt3, groups3)
    assert jnp.allclose(loss3, ref3, rtol=1e-5, atol=1e-6), (loss3, ref3)

    print("KERNEL_OK")
</pallas_src>

<mosaic_0001>
module attributes {stable_mosaic.version = 11 : i64} {
  func.func @_multicore_kl_kernel(%arg0: i32, %arg1: i32, %arg2: memref<1x4x256xf32, #tpu.memory_space<vmem>>, %arg3: memref<1x2x256xf32, #tpu.memory_space<vmem>>, %arg4: memref<2x4xf32, #tpu.memory_space<vmem>>, %arg5: memref<1x1x8x128xf32, #tpu.memory_space<vmem>>, %arg6: memref<1x256xf32, #tpu.memory_space<vmem>>, %arg7: memref<1x256xf32, #tpu.memory_space<vmem>>) attributes {dimension_semantics = [#tpu.dimension_semantics<parallel>, #tpu.dimension_semantics<parallel>], iteration_bounds = array<i64: 2, 1>, scalar_prefetch = 0 : i64, scratch_operands = 2 : i64, tpu.core_type = #tpu.core_type<tc>, window_params = [{transform_indices = @transform_0, window_bounds = array<i64: 1, 4, 256>}, {transform_indices = @transform_1, window_bounds = array<i64: 1, 2, 256>}, {pipeline_mode = #tpu.pipeline_mode<synchronous>, transform_indices = @transform_2, window_bounds = array<i64: 2, 4>}, {transform_indices = @transform_3, window_bounds = array<i64: 1, 1, 8, 128>}]} {
    %c0 = arith.constant 0 : index
    %c0_0 = arith.constant 0 : index
    %0 = vector.load %arg4[%c0, %c0_0] : memref<2x4xf32, #tpu.memory_space<vmem>>, vector<2x4xf32>
    %c0_i32 = arith.constant 0 : i32
    %1 = arith.index_cast %c0_i32 : i32 to index
    %c0_1 = arith.constant 0 : index
    %c0_2 = arith.constant 0 : index
    %2 = vector.load %arg2[%1, %c0_1, %c0_2] : memref<1x4x256xf32, #tpu.memory_space<vmem>>, vector<1x4x256xf32>
    %3 = vector.shape_cast %2 : vector<1x4x256xf32> to vector<4x256xf32>
    %4 = arith.index_cast %c0_i32 : i32 to index
    %c0_3 = arith.constant 0 : index
    %c0_4 = arith.constant 0 : index
    %5 = vector.load %arg3[%4, %c0_3, %c0_4] : memref<1x2x256xf32, #tpu.memory_space<vmem>>, vector<1x2x256xf32>
    %6 = vector.shape_cast %5 : vector<1x2x256xf32> to vector<2x256xf32>
    %cst = arith.constant dense<0.000000e+00> : vector<2x256xf32>
    %7 = tpu.matmul %0, %3, %cst {dimension_numbers = #tpu.dot_dimension_numbers<[1], [0], [0], [1], [0, 0, 1, 1], [], []>} : vector<2x4xf32>, vector<4x256xf32>, vector<2x256xf32> -> vector<2x256xf32>
    %8 = arith.mulf %6, %7 : vector<2x256xf32>
    %cst_5 = arith.constant dense<0.000000e+00> : vector<256xf32>
    %9 = vector.multi_reduction <add>, %8, %cst_5 [0] : vector<2x256xf32> to vector<256xf32>
    %10 = vector.shape_cast %9 : vector<256xf32> to vector<1x256xf32>
    %11 = arith.index_cast %c0_i32 : i32 to index
    %c0_6 = arith.constant 0 : index
    %12 = vector.load %arg6[%11, %c0_6] : memref<1x256xf32, #tpu.memory_space<vmem>>, vector<1x256xf32>
    tpu.vector_store %arg6[%11, %c0_6], %10 {strides = array<i32>} : memref<1x256xf32, #tpu.memory_space<vmem>>, vector<1x256xf32>,
    %cst_7 = arith.constant dense<0.000000e+00> : vector<256xf32>
    %13 = vector.multi_reduction <add>, %6, %cst_7 [0] : vector<2x256xf32> to vector<256xf32>
    %14 = vector.shape_cast %13 : vector<256xf32> to vector<1x256xf32>
    %15 = arith.index_cast %c0_i32 : i32 to index
    %c0_8 = arith.constant 0 : index
    %16 = vector.load %arg7[%15, %c0_8] : memref<1x256xf32, #tpu.memory_space<vmem>>, vector<1x256xf32>
    tpu.vector_store %arg7[%15, %c0_8], %14 {strides = array<i32>} : memref<1x256xf32, #tpu.memory_space<vmem>>, vector<1x256xf32>,
    %c1_i32 = arith.constant 1 : i32
    %c0_9 = arith.constant 0 : index
    %c0_10 = arith.constant 0 : index
    %17 = vector.load %arg7[%c0_9, %c0_10] : memref<1x256xf32, #tpu.memory_space<vmem>>, vector<1x256xf32>
    %cst_11 = arith.constant 0.000000e+00 : f32
    %18 = vector.broadcast %cst_11 : f32 to vector<1x256xf32>
    %19 = arith.subf %18, %17 : vector<1x256xf32>
    %c0_12 = arith.constant 0 : index
    %c0_13 = arith.constant 0 : index
    %20 = vector.load %arg6[%c0_12, %c0_13] : memref<1x256xf32, #tpu.memory_space<vmem>>, vector<1x256xf32>
    %cst_14 = arith.constant 1.000000e-16 : f32
    %21 = vector.broadcast %cst_14 : f32 to vector<1x256xf32>
    %22 = arith.addf %20, %21 : vector<1x256xf32>
    %23 = math.log %22 : vector<1x256xf32>
    %24 = arith.mulf %19, %23 : vector<1x256xf32>
    %cst_15 = arith.constant dense<0.000000e+00> : vector<1xf32>
    %25 = vector.multi_reduction <add>, %24, %cst_15 [1] : vector<1x256xf32> to vector<1xf32>
    %26 = vector.shape_cast %25 : vector<1xf32> to vector<1x1xf32>
    %cst_16 = arith.constant dense<0.000000e+00> : vector<1xf32>
    %27 = vector.multi_reduction <add>, %26, %cst_16 [0] : vector<1x1xf32> to vector<1xf32>
    %28 = vector.shape_cast %27 : vector<1xf32> to vector<1x1xf32>
    %29 = vector.shape_cast %28 : vector<1x1xf32> to vector<1x1xf32>
    %30 = vector.broadcast %29 : vector<1x1xf32> to vector<8x128xf32>
    %c0_17 = arith.constant 0 : index
    %c0_18 = arith.constant 0 : index
    %c0_19 = arith.constant 0 : index
    %c0_20 = arith.constant 0 : index
    %31 = vector.load %arg5[%c0_17, %c0_18, %c0_19, %c0_20] : memref<1x1x8x128xf32, #tpu.memory_space<vmem>>, vector<1x1x8x128xf32>
    %32 = vector.shape_cast %31 : vector<1x1x8x128xf32> to vector<8x128xf32>
    %33 = vector.shape_cast %30 : vector<8x128xf32> to vector<1x1x8x128xf32>
    tpu.vector_store %arg5[%c0_17, %c0_18, %c0_19, %c0_20], %33 {strides = array<i32>} : memref<1x1x8x128xf32, #tpu.memory_space<vmem>>, vector<1x1x8x128xf32>,
    return
  }
  func.func @transform_0(%arg0: i32, %arg1: i32) -> (i32, i32, i32) {
    %c0_i32 = arith.constant 0 : i32
    %c0_i32_0 = arith.constant 0 : i32
    return %arg0, %c0_i32, %arg1 : i32, i32, i32
  }
  func.func @transform_1(%arg0: i32, %arg1: i32) -> (i32, i32, i32) {
    %c0_i32 = arith.constant 0 : i32
    %c0_i32_0 = arith.constant 0 : i32
    return %arg0, %c0_i32, %arg1 : i32, i32, i32
  }
  func.func @transform_2(%arg0: i32, %arg1: i32) -> (i32, i32) {
    %c0_i32 = arith.constant 0 : i32
    %c0_i32_0 = arith.constant 0 : i32
    %c0_i32_1 = arith.constant 0 : i32
    return %c0_i32, %c0_i32_0 : i32, i32
  }
  func.func @transform_3(%arg0: i32, %arg1: i32) -> (i32, i32, i32, i32) {
    %c0_i32 = arith.constant 0 : i32
    %c0_i32_0 = arith.constant 0 : i32
    %c0_i32_1 = arith.constant 0 : i32
    return %arg0, %arg1, %c0_i32, %c0_i32_0 : i32, i32, i32, i32
  }
}

</mosaic_0001>

<llo_original>
// kernel: tpu_custom_call.1
$region0: #{tpu_custom_call.1}
  #allocation0 [shape = 'u32[]', space=smem, size = 0x4, offset = 0x4, fixed_abs, tag = 'smem constant byte address 0x4 - core index']
  #allocation1 [shape = 'u32[144,128]{1,0:T(1,128)}', space=vmem, size = 0x12000, scoped, tag = 'internal scratch']
  #allocation2 [shape = 'f32[1,256]{1,0:T(1,128)}', space=vmem, size = 0x400, scoped, tag = 'scratch operand']
  #allocation3 [shape = 'f32[1,256]{1,0:T(1,128)}', space=vmem, size = 0x400, scoped, tag = 'scratch operand']
  %s0 = inlined_call_operand.hbm [shape: f32[2,4,256], index: 0, kind: input, shape index: {}]
  %s1 = inlined_call_operand.hbm [shape: f32[2,2,256], index: 1, kind: input, shape index: {}]
  %s2 = inlined_call_operand.vmem [shape: f32[2,4], index: 2, kind: input, shape index: {}]
  %s3 = inlined_call_operand.hbm [shape: f32[2,1,8,128], index: 3, kind: output, shape index: {}]
  %s4 = sld [smem:[#allocation0]]
  $region53: #{tpu_custom_call.1} parent=0
    _
  %s6 = ssub.s32 1, %s4
  %s7 = scalar_select 0, %s6, %s4
  $region1: #{tpu_custom_call.1} parent=0
    #allocation4 [shape = 'u8[8192]{0}', space=vmem, size = 0x2000, scoped, tag = 'input window, operand 0']
    #allocation5 [shape = 's32[2]{0}', space=sflag, size = 0x8, scoped, tag = 'scoped memory for tpu_custom_call.1']
    #allocation6 [shape = 's32[2]{0}', space=sflag, size = 0x8, scoped, tag = 'scoped memory for tpu_custom_call.1']
    #allocation7 [shape = 'u8[4096]{0}', space=vmem, size = 0x1000, scoped, tag = 'input window, operand 1']
    #allocation8 [shape = 's32[2]{0}', space=sflag, size = 0x8, scoped, tag = 'scoped memory for tpu_custom_call.1']
    #allocation9 [shape = 'u8[8192]{0}', space=vmem, size = 0x2000, scoped, tag = 'output window, operand 0']
    %8 = vsyncpa [#allocation5], 0
    %s9 = scalar_lea.sflag [#allocation5], 1
    %10 = vsyncpa %s9, 0
    %11 = vsyncpa [#allocation8], 0
    %s12 = scalar_lea.sflag [#allocation8], 1
    %13 = vsyncpa %s12, 0
    %14 = vsyncpa [#allocation6], 0
    %s15 = scalar_lea.sflag [#allocation6], 1
    %16 = vsyncpa %s15, 0
    loop: start=0, step=1, limit=4
    $region2: #{tpu_custom_call.1} parent=1 // loop_pre_header
      _
    $region3: #{tpu_custom_call.1} parent=1 // loop_header
      %s18 = sphi 0, %s22
      %p19 = scmp.ge.s32.totalorder %s18, 4
      %s25 = sphi 0, %s37
      %s26 = sphi 0, %s33
      %s27 = sphi 0, %s25
      %s28 = sphi 0, %s26
      %s29 = sphi 0, %s27
      %s30 = sphi 0, %s28
      %s42 = sphi 0, %s44
      %s45 = sphi 0, %s42
      %s46 = sphi 0, %s45
      %s62 = sphi 0, %s46
      %s70 = sphi 0, %s72
      %s73 = sphi 0, %s70
      %s74 = sphi 0, %s73
      %s90 = sphi 0, %s74
      %s94 = sphi 0, %s94
      %s96 = sphi 0, %s94
      %s97 = sphi 0, %s96
      %s111 = sphi 0, %s97
      %s119 = sphi 0, %s121
      %s122 = sphi 0, %s119
      %s123 = sphi 0, %s122
      %s139 = sphi 0, %s123
    $region4: #{tpu_custom_call.1} parent=1 // loop_header_branch
      %21 = sbr.rel (%p19) target = $region8
    $region5: #{tpu_custom_call.1} parent=1 // loop_body
      %s23 = ssub.s32 %s18, 1
      %s24 = ssub.s32 %s18, 2
      %s31 = sadd.s32 1, %s26
      %p32 = scmp.ge.s32.totalorder %s31, 1
      %s33 = scalar_select %p32, 0, %s31
      %s34 = sadd.s32 1, %s25
      %s35 = scalar_select %p32, %s34, %s25
      %p36 = scmp.ge.s32.totalorder %s35, 2
      %s37 = scalar_select %p36, 0, %s35
      %s38 = ssub.s32 %s25, %s37
      %s39 = ssub.s32 %s26, %s33
      %s40 = sor.u32 %s38, %s39
      %p41 = scmp.eq.s32.totalorder %s40, 0
      %s43 = sadd.s32 %s42, 1
      %s44 = scalar_select %p41, %s42, %s43
      %p47 = pneg %p41
      %p48 = scmp.eq.s32.totalorder %s18, 1
      %p49 = por %p47, %p48
      %p50 = scmp.ne.s32.totalorder %s42, %s45
      %p51 = scmp.eq.s32.totalorder %s18, 0
      %p52 = por %p50, %p51
      %p53 = scmp.ne.s32.totalorder %s42, %s45
      %p54 = scmp.eq.s32.totalorder %s23, 1
      %p55 = por %p53, %p54
      %p56 = scmp.ne.s32.totalorder %s45, %s46
      %p57 = scmp.eq.s32.totalorder %s23, 0
      %p58 = por %p56, %p57
      %p59 = scmp.ne.s32.totalorder %s45, %s46
      %p60 = scmp.eq.s32.totalorder %s24, 1
      %p61 = por %p59, %p60
      %p63 = scmp.ne.s32.totalorder %s46, %s62
      %p64 = scmp.eq.s32.totalorder %s24, 0
      %p65 = por %p63, %p64
      %s66 = ssub.s32 %s25, %s37
      %s67 = ssub.s32 %s26, %s33
      %s68 = sor.u32 %s66, %s67
      %p69 = scmp.eq.s32.totalorder %s68, 0
      %s71 = sadd.s32 %s70, 1
      %s72 = scalar_select %p69, %s70, %s71
      %p75 = pneg %p69
      %p76 = scmp.eq.s32.totalorder %s18, 1
      %p77 = por %p75, %p76
      %p78 = scmp.ne.s32.totalorder %s70, %s73
      %p79 = scmp.eq.s32.totalorder %s18, 0
      %p80 = por %p78, %p79
      %p81 = scmp.ne.s32.totalorder %s70, %s73
      %p82 = scmp.eq.s32.totalorder %s23, 1
      %p83 = por %p81, %p82
      %p84 = scmp.ne.s32.totalorder %s73, %s74
      %p85 = scmp.eq.s32.totalorder %s23, 0
      %p86 = por %p84, %p85
      %p87 = scmp.ne.s32.totalorder %s73, %s74
      %p88 = scmp.eq.s32.totalorder %s24, 1
      %p89 = por %p87, %p88
      %p91 = scmp.ne.s32.totalorder %s74, %s90
      %p92 = scmp.eq.s32.totalorder %s24, 0
      %p93 = por %p91, %p92
      %s95 = sadd.s32 %s94, 1
      %p98 = scmp.eq.s32.totalorder %s18, 1
      %p99 = scmp.ne.s32.totalorder %s94, %s96
      %p100 = scmp.eq.s32.totalorder %s18, 0
      %p101 = por %p99, %p100
      %p102 = scmp.ne.s32.totalorder %s94, %s96
      %p103 = scmp.eq.s32.totalorder %s23, 1
      %p104 = por %p102, %p103
      %p105 = scmp.ne.s32.totalorder %s96, %s97
      %p106 = scmp.eq.s32.totalorder %s23, 0
      %p107 = por %p105, %p106
      %p108 = scmp.ne.s32.totalorder %s96, %s97
      %p109 = scmp.eq.s32.totalorder %s24, 1
      %p110 = por %p108, %p109
      %p112 = scmp.ne.s32.totalorder %s97, %s111
      %p113 = scmp.eq.s32.totalorder %s24, 0
      %p114 = por %p112, %p113
      %s115 = ssub.s32 %s25, %s37
      %s116 = ssub.s32 %s26, %s33
      %s117 = sor.u32 %s115, %s116
      %p118 = scmp.eq.s32.totalorder %s117, 0
      %s120 = sadd.s32 %s119, 1
      %s121 = scalar_select %p118, %s119, %s120
      %p124 = pneg %p118
      %p125 = scmp.eq.s32.totalorder %s18, 1
      %p126 = por %p124, %p125
      %p127 = scmp.ne.s32.totalorder %s119, %s122
      %p128 = scmp.eq.s32.totalorder %s18, 0
      %p129 = por %p127, %p128
      %p130 = scmp.ne.s32.totalorder %s119, %s122
      %p131 = scmp.eq.s32.totalorder %s23, 1
      %p132 = por %p130, %p131
      %p133 = scmp.ne.s32.totalorder %s122, %s123
      %p134 = scmp.eq.s32.totalorder %s23, 0
      %p135 = por %p133, %p134
      %p136 = scmp.ne.s32.totalorder %s122, %s123
      %p137 = scmp.eq.s32.totalorder %s24, 1
      %p138 = por %p136, %p137
      %p140 = scmp.ne.s32.totalorder %s123, %s139
      %p141 = scmp.eq.s32.totalorder %s24, 0
      %p142 = por %p140, %p141
      %p143 = scmp.le.s32.totalorder 1, %s18
      %p144 = scmp.lt.s32.totalorder %s18, 3
      %p145 = pnand %p143, %p144
      %p146 = pneg %p145
      // Predicated region
      $region9: #{tpu_custom_call.1} parent=5 // pred_check
        _
      $region10: #{tpu_custom_call.1} parent=5 // pred_check_branch
        %148 = sbr.rel (%p145) target = $region12
      $region11: #{tpu_custom_call.1} parent=5 // pred_region
        %s149 = ssub.s32 %s18, 1
        // Predicated region
        $region13: #{tpu_custom_call.1} parent=11 // pred_check
          %p150 = pneg %p107
        $region14: #{tpu_custom_call.1} parent=11 // pred_check_branch
          %152 = sbr.rel (%p150) target = $region16
        $region15: #{tpu_custom_call.1} parent=11 // pred_region
          _
        $region16: #{tpu_custom_call.1} parent=11 // pred_fallthru
          _
      $region12: #{tpu_custom_call.1} parent=5 // pred_fallthru
        _
      %p153 = scmp.lt.s32.totalorder %s18, 2
      // Predicated region
      $region17: #{tpu_custom_call.1} parent=5 // pred_check
        %p154 = pneg %p153
      $region18: #{tpu_custom_call.1} parent=5 // pred_check_branch
        %156 = sbr.rel (%p154) target = $region20
      $region19: #{tpu_custom_call.1} parent=5 // pred_region
        // Predicated region
        $region21: #{tpu_custom_call.1} parent=19 // pred_check
          %p157 = pneg %p52
        $region22: #{tpu_custom_call.1} parent=19 // pred_check_branch
          %159 = sbr.rel (%p157) target = $region24
        $region23: #{tpu_custom_call.1} parent=19 // pred_region
          %s160 = sand.u32 %s42, 1
          %s161 = scalar_lea.sflag [#allocation5], %s160
          %s162 = sand.u32 %s42, 1
          %s163 = smul.addr %s162, 8
          %s164 = scalar_lea.vmem [#allocation4], %s163
          %s165 = smul.u32 2, %s26
          %s167 = ssub.s32 128, 128
          %168 = vsyncadd %s161, %s167
          %s169 = smul.addr %s25, 2
          %s170 = sadd.s32 %s165, %s169
          %s171 = smul.addr %s170, 64
          %s172 = scalar_lea.hbm %s0, %s171
          %s174 = sshll.u32 %s164, 4
          %s175 = int_to_ptr.vmem [resolvable:$true] %s174
          %177 = dma.hbm_to_vmem [thread:$0]  %s172, 128, %s175, %s161
        $region24: #{tpu_custom_call.1} parent=19 // pred_fallthru
          _
        // Predicated region
        $region25: #{tpu_custom_call.1} parent=19 // pred_check
          %p178 = pneg %p80
        $region26: #{tpu_custom_call.1} parent=19 // pred_check_branch
          %180 = sbr.rel (%p178) target = $region28
        $region27: #{tpu_custom_call.1} parent=19 // pred_region
          %s181 = sand.u32 %s70, 1
          %s182 = scalar_lea.sflag [#allocation8], %s181
          %s183 = sand.u32 %s70, 1
          %s184 = smul.addr %s183, 4
          %s185 = scalar_lea.vmem [#allocation7], %s184
          %s186 = smul.u32 2, %s26
          %s188 = ssub.s32 64, 64
          %189 = vsyncadd %s182, %s188
          %s190 = smul.addr %s25, 2
          %s191 = sadd.s32 %s186, %s190
          %s192 = smul.addr %s191, 32
          %s193 = scalar_lea.hbm %s1, %s192
          %s195 = sshll.u32 %s185, 4
          %s196 = int_to_ptr.vmem [resolvable:$true] %s195
          %198 = dma.hbm_to_vmem [thread:$0]  %s193, 64, %s196, %s182
        $region28: #{tpu_custom_call.1} parent=19 // pred_fallthru
          _
      $region20: #{tpu_custom_call.1} parent=5 // pred_fallthru
        _
      %p199 = scmp.le.s32.totalorder 1, %s18
      %p200 = scmp.lt.s32.totalorder %s18, 3
      %p201 = pnand %p199, %p200
      %p202 = pneg %p201
      // Predicated region
      $region29: #{tpu_custom_call.1} parent=5 // pred_check
        _
      $region30: #{tpu_custom_call.1} parent=5 // pred_check_branch
        %204 = sbr.rel (%p201) target = $region32
      $region31: #{tpu_custom_call.1} parent=5 // pred_region
        %s205 = ssub.s32 %s18, 1
        %s206 = sand.u32 %s45, 1
        %s207 = scalar_lea.sflag [#allocation5], %s206
        %s208 = sand.u32 %s45, 1
        %s209 = smul.addr %s208, 8
        %s210 = scalar_lea.vmem [#allocation4], %s209
        // Predicated region
        $region33: #{tpu_custom_call.1} parent=31 // pred_check
          %p211 = pneg %p58
        $region34: #{tpu_custom_call.1} parent=31 // pred_check_branch
          %213 = sbr.rel (%p211) target = $region36
        $region35: #{tpu_custom_call.1} parent=31 // pred_region
          %214 = dma.done %s207, 128
        $region36: #{tpu_custom_call.1} parent=31 // pred_fallthru
          _
        %s215 = sand.u32 %s73, 1
        %s216 = scalar_lea.sflag [#allocation8], %s215
        %s217 = sand.u32 %s73, 1
        %s218 = smul.addr %s217, 4
        %s219 = scalar_lea.vmem [#allocation7], %s218
        // Predicated region
        $region37: #{tpu_custom_call.1} parent=31 // pred_check
          %p220 = pneg %p86
        $region38: #{tpu_custom_call.1} parent=31 // pred_check_branch
          %222 = sbr.rel (%p220) target = $region40
        $region39: #{tpu_custom_call.1} parent=31 // pred_region
          %223 = dma.done %s216, 64
        $region40: #{tpu_custom_call.1} parent=31 // pred_fallthru
          _
        %s224 = sand.u32 %s45, 1
        %s225 = scalar_lea.sflag [#allocation5], %s224
        %s226 = sand.u32 %s45, 1
        %s227 = smul.addr %s226, 8
        %s228 = scalar_lea.vmem [#allocation4], %s227
        %p229 = pneg %p58
        %p230 = pneg %p55
        %s231 = sand.u32 %s73, 1
        %s232 = scalar_lea.sflag [#allocation8], %s231
        %s233 = sand.u32 %s73, 1
        %s234 = smul.addr %s233, 4
        %s235 = scalar_lea.vmem [#allocation7], %s234
        %p236 = pneg %p86
        %p237 = pneg %p83
        %p238 = pneg %p107
        %p239 = pneg %p104
        %p240 = pneg %p135
        %p241 = pneg %p132
        %s242 = sand.u32 %s122, 1
        %s243 = scalar_lea.sflag [#allocation6], %s242
        %s244 = sand.u32 %s122, 1
        %s245 = smul.addr %s244, 8
        %s246 = scalar_lea.vmem [#allocation9], %s245
        %s247 = smul.u32 2, %s28
        %s248 = smul.u32 2, %s28
        %v249 = vld [vmem:[%s2] sm:$0x3]
        %v250 = vld [vmem:[%s210] sm:$0xff]
        %v251 = vld [vmem:[%s219] sm:$0xf]
        %v253 = vcombine.high %v250, %v250
        %vm254 = vcmask 31744
        %v256 = vsel %vm254, %v249, 0
        %vm258 = vcmask 1043456
        %v259 = vsel %vm258, %v250, 0
        %v261 = vsel %vm258, %v253, 0
        %263 = vmatprep.subr.mxu0 0.0
        %264 = vmatpush1.msra.mxu0 0.0
        %265 = vmatprep.subr.mxu0 0.0
        %266 = vmatpush1.msra.mxu0 0.0
        %267 = vmatprep.subr.mxu0 0.0
        %268 = vmatpush1.msra.mxu0 0.0
        %269 = vmatprep.subr.mxu0 0.0
        %270 = vmatpush1.msra.mxu0 0.0
        %271 = vmatprep.subr.mxu0 0.0
        %272 = vmatpush1.msra.mxu0 0.0
        %273 = vmatprep.subr.mxu0 0.0
        %274 = vmatpush1.msra.mxu0 0.0
        %275 = vmatprep.subr.mxu0 0.0
        %276 = vmatpush1.msra.mxu0 0.0
        %277 = vmatprep.subr.mxu0 0.0
        %278 = vmatpush1.msra.mxu0 0.0
        %279 = vmatprep.subr.mxu0 0.0
        %280 = vmatpush1.msra.mxu0 0.0
        %281 = vmatprep.subr.mxu0 0.0
        %282 = vmatpush1.msra.mxu0 0.0
        %283 = vmatprep.subr.mxu0 0.0
        %284 = vmatpush1.msra.mxu0 0.0
        %285 = vmatprep.subr.mxu0 0.0
        %286 = vmatpush1.msra.mxu0 0.0
        %287 = vmatprep.subr.mxu0 0.0
        %288 = vmatpush1.msra.mxu0 0.0
        %289 = vmatprep.subr.mxu0 0.0
        %290 = vmatpush1.msra.mxu0 0.0
        %291 = vmatprep.subr.mxu0 0.0
        %292 = vmatpush1.msra.mxu0 0.0
        %293 = vmatprep.subr.mxu0 %v261
        %294 = vmatpush1.msra.mxu0 %v259
        %295 = vmatprep.subr.mxu0 0.0
        %296 = vmatpush2.msra.mxu0 0.0
        %297 = vmatprep.subr.mxu0 0.0
        %298 = vmatpush2.msra.mxu0 0.0
        %299 = vmatprep.subr.mxu0 0.0
        %300 = vmatpush2.msra.mxu0 0.0
        %301 = vmatprep.subr.mxu0 0.0
        %302 = vmatpush2.msra.mxu0 0.0
        %303 = vmatprep.subr.mxu0 0.0
        %304 = vmatpush2.msra.mxu0 0.0
        %305 = vmatprep.subr.mxu0 0.0
        %306 = vmatpush2.msra.mxu0 0.0
        %307 = vmatprep.subr.mxu0 0.0
        %308 = vmatpush2.msra.mxu0 0.0
        %309 = vmatprep.subr.mxu0 0.0
        %310 = vmatpush2.msra.mxu0 0.0
        %311 = vmatprep.subr.mxu0 0.0
        %312 = vmatpush2.msra.mxu0 0.0
        %313 = vmatprep.subr.mxu0 0.0
        %314 = vmatpush2.msra.mxu0 0.0
        %315 = vmatprep.subr.mxu0 0.0
        %316 = vmatpush2.msra.mxu0 0.0
        %317 = vmatprep.subr.mxu0 0.0
        %318 = vmatpush2.msra.mxu0 0.0
        %319 = vmatprep.subr.mxu0 0.0
        %320 = vmatpush2.msra.mxu0 0.0
        %321 = vmatprep.subr.mxu0 0.0
        %322 = vmatpush2.msra.mxu0 0.0
        %323 = vmatprep.subr.mxu0 0.0
        %324 = vmatpush2.msra.mxu0 0.0
        %325 = vmatprep.subr.mxu0 0.0
        %326 = vmatpush2.msra.mxu0 0.0
        %327 = vmatprep.mubr.f32.mxu0 0.0
        %328 = vmatmul.mubr.f32.gmra.mxu0 %v256
        %v329 = vpop.f32.mrf.mxu0
        %v330 = vadd.f32 0.0, %v329
        %v331 = vpop.f32.mrf.mxu0
        %v332 = vadd.f32 0.0, %v331
        %333 = vdwg.mxu0
        %v336 = vcombine.low %v330, %v332
        %v338 = vunpack.c.l.s4 1983009808
        %v339 = vunpack.c.0.s8 %v338
        %v340 = vlaneseq
        %v341 = vshrl.u32 %v340, 7
        %v342 = vsub.s32 %v339, %v341
        %v343 = vrot.slane %v336, %v342
        %v345 = vmul.f32 %v251, %v343
        %v348 = vunpack.c.l.s4 1983009808
        %v349 = vunpack.c.0.s8 %v348
        %v350 = vlaneseq
        %v351 = vshrl.u32 %v350, 7
        %v352 = vsub.s32 %v349, %v351
        %v353 = vrot.slane %v345, %v352
        %v354 = vcombine.high %v353, %v353
        %vm357 = vcmask 1041408
        %v358 = vsel %vm357, %v353, 0.0
        %v359 = vrot.slane %v358, 4
        %v360 = vadd.f32 %v358, %v359
        %v361 = vrot.slane %v360, 2
        %v362 = vadd.f32 %v360, %v361
        %v363 = vrot.slane %v362, 1
        %v364 = vadd.f32 %v362, %v363
        %v365 = vsel %vm357, %v354, 0.0
        %v366 = vrot.slane %v365, 4
        %v367 = vadd.f32 %v365, %v366
        %v368 = vrot.slane %v367, 2
        %v369 = vadd.f32 %v367, %v368
        %v370 = vrot.slane %v369, 1
        %v371 = vadd.f32 %v369, %v370
        %v374 = vcombine.low %v364, %v371
        %v376 = vunpack.c.l.s4 1966171168
        %v377 = vunpack.c.0.s8 %v376
        %v378 = vlaneseq
        %v379 = vshrl.u32 %v378, 7
        %v380 = vsub.s32 %v377, %v379
        %v381 = vrot.slane %v374, %v380
        %v383 = vunpack.c.l.s4 1966171168
        %v384 = vunpack.c.0.s8 %v383
        %v385 = vlaneseq
        %v386 = vshrl.u32 %v385, 7
        %v387 = vsub.s32 %v384, %v386
        %v388 = vrot.slane %v381, %v387
        %v390 = vlaneseq
        %vm391 = vcmp.ge.s32.totalorder %v390, 0
        %vm392 = vcmp.lt.s32.totalorder %v390, 256
        %vm393 = vmand %vm391, %vm392
        %394 = vst.msk [vmem:[#allocation2] sm:$0x3] %vm393, %v388
        %v397 = vunpack.c.l.s4 1983009808
        %v398 = vunpack.c.0.s8 %v397
        %v399 = vlaneseq
        %v400 = vshrl.u32 %v399, 7
        %v401 = vsub.s32 %v398, %v400
        %v402 = vrot.slane %v251, %v401
        %v403 = vcombine.high %v402, %v402
        %v406 = vsel %vm357, %v402, 0.0
        %v407 = vrot.slane %v406, 4
        %v408 = vadd.f32 %v406, %v407
        %v409 = vrot.slane %v408, 2
        %v410 = vadd.f32 %v408, %v409
        %v411 = vrot.slane %v410, 1
        %v412 = vadd.f32 %v410, %v411
        %v413 = vsel %vm357, %v403, 0.0
        %v414 = vrot.slane %v413, 4
        %v415 = vadd.f32 %v413, %v414
        %v416 = vrot.slane %v415, 2
        %v417 = vadd.f32 %v415, %v416
        %v418 = vrot.slane %v417, 1
        %v419 = vadd.f32 %v417, %v418
        %v422 = vcombine.low %v412, %v419
        %v424 = vunpack.c.l.s4 1966171168
        %v425 = vunpack.c.0.s8 %v424
        %v426 = vlaneseq
        %v427 = vshrl.u32 %v426, 7
        %v428 = vsub.s32 %v425, %v427
        %v429 = vrot.slane %v422, %v428
        %v431 = vunpack.c.l.s4 1966171168
        %v432 = vunpack.c.0.s8 %v431
        %v433 = vlaneseq
        %v434 = vshrl.u32 %v433, 7
        %v435 = vsub.s32 %v432, %v434
        %v436 = vrot.slane %v429, %v435
        %438 = vst.msk [vmem:[#allocation3] sm:$0x3] %vm393, %v436
        %v439 = vld [vmem:[#allocation3] sm:$0x3]
        %v440 = vsub.f32 0.0, %v439
        %v441 = vld [vmem:[#allocation2] sm:$0x3]
        %v442 = vadd.f32 %v441, 1e-16
        %v443 = vlog2.pop %v442
        %v444 = vmul.f32 %v443, 0.6931472
        %v445 = vmul.f32 %v440, %v444
        %v447 = vlaneseq
        %v448 = vshrl.u32 %v447, 7
        %v449 = vsub.s32 0, %v448
        %v450 = vrot.slane %v445, %v449
        %v451 = vlaneseq
        %v452 = vshrl.u32 %v451, 7
        %v453 = vsub.s32 1, %v452
        %v454 = vrot.slane %v445, %v453
        %vm457 = vcmask 1040384
        %v458 = vsel %vm457, %v450, 0.0
        %v459 = vsel %vm457, %v454, 0.0
        %v460 = vadd.f32 %v458, %v459
        %461 = vadd.xlane.f32.xlu0 %v460
        %v462 = vpop.xlane.xlu0 %461
        %v463 = vadd.f32 %v462, 0.0
        %v464 = vlaneseq
        %v465 = vshrl.u32 %v464, 7
        %v466 = vsub.s32 0, %v465
        %v467 = vrot.slane %v463, %v466
        %468 = vst [vmem:[%s246] sm:$0xff] %v467
        %s469 = sand.u32 %s122, 1
        %s470 = scalar_lea.sflag [#allocation6], %s469
        %s471 = sand.u32 %s122, 1
        %s472 = smul.addr %s471, 8
        %s473 = scalar_lea.vmem [#allocation9], %s472
        // Predicated region
        $region41: #{tpu_custom_call.1} parent=31 // pred_check
          %p474 = pneg %p132
        $region42: #{tpu_custom_call.1} parent=31 // pred_check_branch
          %476 = sbr.rel (%p474) target = $region44
        $region43: #{tpu_custom_call.1} parent=31 // pred_region
          %s478 = ssub.s32 128, 128
          %479 = vsyncadd %s470, %s478
          %s480 = sadd.s32 %s28, %s27
          %s481 = smul.addr %s480, 128
          %s482 = scalar_lea.hbm %s3, %s481
          %s484 = sshll.u32 %s473, 4
          %s485 = int_to_ptr.vmem [resolvable:$true] %s484
          %487 = dma.vmem_to_hbm [thread:$0]  %s485, 128, %s482, %s470
        $region44: #{tpu_custom_call.1} parent=31 // pred_fallthru
          _
      $region32: #{tpu_custom_call.1} parent=5 // pred_fallthru
        _
      %p488 = scmp.le.s32.totalorder 2, %s18
      // Predicated region
      $region45: #{tpu_custom_call.1} parent=5 // pred_check
        %p489 = pneg %p488
      $region46: #{tpu_custom_call.1} parent=5 // pred_check_branch
        %491 = sbr.rel (%p489) target = $region48
      $region47: #{tpu_custom_call.1} parent=5 // pred_region
        %s492 = ssub.s32 %s18, 2
        // Predicated region
        $region49: #{tpu_custom_call.1} parent=47 // pred_check
          %p493 = pneg %p138
        $region50: #{tpu_custom_call.1} parent=47 // pred_check_branch
          %495 = sbr.rel (%p493) target = $region52
        $region51: #{tpu_custom_call.1} parent=47 // pred_region
          %s496 = sand.u32 %s123, 1
          %s497 = scalar_lea.sflag [#allocation6], %s496
          %s498 = sand.u32 %s123, 1
          %s499 = smul.addr %s498, 8
          %s500 = scalar_lea.vmem [#allocation9], %s499
          %501 = dma.done %s497, 128
        $region52: #{tpu_custom_call.1} parent=47 // pred_fallthru
          _
      $region48: #{tpu_custom_call.1} parent=5 // pred_fallthru
        _
    $region6: #{tpu_custom_call.1} parent=1 // loop_footer
      %s22 = sadd.s32 1, %s18
    $region7: #{tpu_custom_call.1} parent=1 // loop_footer_branch
      %17 = sbr.rel target = $region3
    $region8: #{tpu_custom_call.1} parent=1 // loop_exit
      _
    %502 = vsyncpa [#allocation5], 1
    %s503 = scalar_lea.sflag [#allocation5], 1
    %504 = vsyncpa %s503, 1
    %505 = vsyncpa [#allocation8], 1
    %s506 = scalar_lea.sflag [#allocation8], 1
    %507 = vsyncpa %s506, 1
    %508 = vsyncpa [#allocation6], 1
    %s509 = scalar_lea.sflag [#allocation6], 1
    %510 = vsyncpa %s509, 1

</llo_original>
